<compile_context>
chip_gen: v7x
topology: tpu7x:2x2x1
jax: 0.10.0
libtpu: 0.0.40
codegen_flags: <defaults>
</compile_context>

<pallas_src>
import jax
import jax.numpy as jnp
from jax import lax
from jax.experimental import pallas as pl
from jax.experimental.pallas import tpu as pltpu

# TODO(synk): EspeakPhonemeConditioner requires espeak-based text phonemization
# (external binary / tokenizer); it has no Pallas equivalent and is excluded from
# the synthetic conditioner set below.

LN_EPS = 1e-5  # torch.nn.LayerNorm default


def _ceil_div(a: int, b: int) -> int:
    return -(-a // b)


def _round_up(a: int, b: int) -> int:
    return _ceil_div(a, b) * b


# ---------------------------------------------------------------------------
# Shared in-kernel math: rows -> Linear -> LayerNorm (f32 statistics).
# ---------------------------------------------------------------------------
def _project_layernorm_rows(x, w, bias, gamma, beta, out_dtype):
    # x: (M, D) matmul-dtype, w: (D, D) matmul-dtype, bias/gamma/beta: (1, D) f32.
    y = jnp.dot(x, w, preferred_element_type=jnp.float32) + bias
    d = y.shape[-1]
    inv_d = 1.0 / d
    mean = jnp.sum(y, axis=-1, keepdims=True) * inv_d
    yc = y - mean
    var = jnp.sum(yc * yc, axis=-1, keepdims=True) * inv_d  # biased, like torch
    normed = yc * lax.rsqrt(var + LN_EPS)
    return (normed * gamma + beta).astype(out_dtype)


def _pack_bgb(b, gamma, beta, d):
    # bias / ln_gamma / ln_beta packed into one sublane-padded (8, D) f32 operand:
    # one DMA + one BlockSpec instead of three.
    bgb = jnp.zeros((8, d), jnp.float32)
    bgb = bgb.at[0].set(b.astype(jnp.float32))
    bgb = bgb.at[1].set(gamma.astype(jnp.float32))
    bgb = bgb.at[2].set(beta.astype(jnp.float32))
    return bgb


# ---------------------------------------------------------------------------
# Fused kernel: per-batch grid step, pieces read separately, output rows written
# at static offsets (replaces HBM concat + reshape + pad + slice).
# ---------------------------------------------------------------------------
def _make_fused_prefix_kernel(seq_lens, mm_dtype):
    offsets = []
    off = 0
    for s in seq_lens:
        offsets.append(off)
        off += s
    n_pieces = len(seq_lens)

    def kernel(*refs):
        piece_refs = refs[:n_pieces]
        w_ref, bgb_ref, o_ref = refs[n_pieces], refs[n_pieces + 1], refs[n_pieces + 2]
        w = w_ref[...]
        bias = bgb_ref[0:1, :]
        gamma = bgb_ref[1:2, :]
        beta = bgb_ref[2:3, :]
        for p_ref, s_len, row_off in zip(piece_refs, seq_lens, offsets):
            x = p_ref[0].astype(mm_dtype)  # (S_i, D)
            o_ref[0, row_off:row_off + s_len, :] = _project_layernorm_rows(
                x, w, bias, gamma, beta, o_ref.dtype
            )

    return kernel


# ---------------------------------------------------------------------------
# Generic 2-D kernel: LayerNorm(x2d @ W + b) over a token-major slab.
# ---------------------------------------------------------------------------
def _proj_ln_kernel(x_ref, w_ref, bgb_ref, o_ref):
    o_ref[...] = _project_layernorm_rows(
        x_ref[...], w_ref[...],
        bgb_ref[0:1, :], bgb_ref[1:2, :], bgb_ref[2:3, :],
        o_ref.dtype,
    )


def project_and_layernorm(x2d, w_t, b, gamma, beta, *, use_bf16=False,
                          out_dtype=jnp.float32, max_tile_m=1024,
                          single_tile_max=256):
    """x2d: (N, D) tokens; returns (N, D) out_dtype = LayerNorm(x2d @ w_t + b).

    Small N  -> single grid step covering all (lightly padded) rows.
    Large N  -> N split as evenly as possible across >=2 (even) row tiles
                (balanced work for both v7x TensorCores, minimal padding).
    use_bf16 -> bf16 matmul operands (valid on v5e/v6e/v7x; MXU is natively bf16);
                LayerNorm statistics stay f32 inside the kernel.
                Pass x2d already in bf16 so the cast fuses into its producer.
    """
    n, d = x2d.shape
    mm_dtype = jnp.bfloat16 if use_bf16 else x2d.dtype
    x_mm = x2d.astype(mm_dtype)   # no-op if caller already provided mm_dtype
    w_mm = w_t.astype(mm_dtype)
    bgb = _pack_bgb(b, gamma, beta, d)

    # bf16 packs 2 rows per sublane -> align row tiles to 16; f32 -> 8.
    row_align = 8 * (4 // jnp.dtype(mm_dtype).itemsize)

    if n <= single_tile_max:
        num_tiles = 1
    else:
        # >=2 and even so both v7x TensorCores get balanced work.
        num_tiles = max(_ceil_div(n, max_tile_m), 2)
        if num_tiles % 2:
            num_tiles += 1
    tile_m = max(row_align, _round_up(_ceil_div(n, num_tiles), row_align))
    n_pad = tile_m * num_tiles
    if n_pad != n:
        # Padded rows are independent under per-row LayerNorm (zeros -> finite),
        # and at most num_tiles*row_align of them.
        x_mm = jnp.pad(x_mm, ((0, n_pad - n), (0, 0)))

    out = pl.pallas_call(
        _proj_ln_kernel,
        out_shape=jax.ShapeDtypeStruct((n_pad, d), out_dtype),
        grid_spec=pltpu.PrefetchScalarGridSpec(
            num_scalar_prefetch=0,
            grid=(num_tiles,),
            in_specs=[
                pl.BlockSpec((tile_m, d), lambda i: (i, 0)),  # x tile
                pl.BlockSpec((d, d), lambda i: (0, 0)),       # resident weight
                pl.BlockSpec((8, d), lambda i: (0, 0)),       # packed bias/gamma/beta
            ],
            out_specs=pl.BlockSpec((tile_m, d), lambda i: (i, 0)),
        ),
        compiler_params=pltpu.CompilerParams(
            dimension_semantics=("parallel",),
        ),
    )(x_mm, w_mm, bgb)
    return out[:n] if n_pad != n else out


# ---------------------------------------------------------------------------
# Sub-conditioners (glue; cheap ops kept in plain JAX)
# ---------------------------------------------------------------------------
def fourier_conditioner(x, weight, min_val=0.0, max_val=1.0):
    # x: (B, S, input_dim); weight: (D//2, input_dim)
    x = (x - min_val) / (max_val - min_val)
    f = 2.0 * jnp.pi * jnp.einsum("bsi,di->bsd", x.astype(weight.dtype), weight)
    return jnp.concatenate([jnp.cos(f), jnp.sin(f)], axis=-1)  # (B, S, D)


def integer_conditioner(x, emb_table, min_val=0):
    # x: (B, 1) int32 -> (B, 1, D)
    return emb_table[x - min_val]


def passthrough_conditioner(x):
    # x: (B, S, D)
    return x


# ---------------------------------------------------------------------------
# PrefixConditioner forward (projection='linear'), fully fused.
# ---------------------------------------------------------------------------
def prefix_conditioner_forward(cond_dict, params, *, use_bf16=False, out_bf16=False):
    mm_dtype = jnp.bfloat16 if use_bf16 else jnp.float32
    out_dtype = jnp.bfloat16 if out_bf16 else jnp.float32
    d = params["proj_w_t"].shape[0]

    # Sub-conditioner outputs, cast to the matmul dtype AT THE PRODUCER so the
    # convert fuses into the producing fusion (no extra HBM re-stream of the slab).
    pieces = [
        fourier_conditioner(cond_dict["speaking_rate"], params["fourier_weight"]).astype(mm_dtype),
        integer_conditioner(cond_dict["language_id"], params["int_embed"]).astype(mm_dtype),
        passthrough_conditioner(cond_dict["speaker_embedding"]).astype(mm_dtype),
    ]

    max_bsz = max(int(p.shape[0]) for p in pieces)
    for i, p in enumerate(pieces):
        if p.shape[0] not in (1, max_bsz):
            raise ValueError(f"Batch size mismatch at piece {i}: {p.shape[0]} vs {max_bsz}")
        if p.shape[2] != d:
            raise ValueError(f"Feature dim mismatch at piece {i}: {p.shape[2]} vs {d}")
    seq_lens = tuple(int(p.shape[1]) for p in pieces)
    s_total = sum(seq_lens)

    bgb = _pack_bgb(params["proj_b"], params["ln_gamma"], params["ln_beta"], d)
    w_mm = params["proj_w_t"].astype(mm_dtype)

    in_specs = []
    for p in pieces:
        s_i = int(p.shape[1])
        if p.shape[0] == 1 and max_bsz > 1:
            # Broadcast batch-1 piece via the index_map: no HBM materialization.
            in_specs.append(pl.BlockSpec((1, s_i, d), lambda bb: (0, 0, 0)))
        else:
            in_specs.append(pl.BlockSpec((1, s_i, d), lambda bb: (bb, 0, 0)))
    in_specs.append(pl.BlockSpec((d, d), lambda bb: (0, 0)))   # weight (resident)
    in_specs.append(pl.BlockSpec((8, d), lambda bb: (0, 0)))   # packed bias/gamma/beta

    kernel = _make_fused_prefix_kernel(seq_lens, mm_dtype)
    out = pl.pallas_call(
        kernel,
        out_shape=jax.ShapeDtypeStruct((max_bsz, s_total, d), out_dtype),
        grid_spec=pltpu.PrefetchScalarGridSpec(
            num_scalar_prefetch=0,
            grid=(max_bsz,),
            in_specs=in_specs,
            out_specs=pl.BlockSpec((1, s_total, d), lambda bb: (bb, 0, 0)),
        ),
        compiler_params=pltpu.CompilerParams(
            dimension_semantics=("parallel",),
        ),
    )(*pieces, w_mm, bgb)
    return out


# ---------------------------------------------------------------------------
# Pure-JAX references for verification.
# ---------------------------------------------------------------------------
def _reference_forward(cond_dict, params):
    pieces = [
        fourier_conditioner(cond_dict["speaking_rate"], params["fourier_weight"]),
        integer_conditioner(cond_dict["language_id"], params["int_embed"]),
        passthrough_conditioner(cond_dict["speaker_embedding"]),
    ]
    max_bsz = max(p.shape[0] for p in pieces)
    pieces = [jnp.broadcast_to(p, (max_bsz,) + p.shape[1:]) for p in pieces]
    cat = jnp.concatenate(pieces, axis=1)
    y = jnp.einsum("bsd,de->bse", cat, params["proj_w_t"]) + params["proj_b"]
    mean = jnp.mean(y, axis=-1, keepdims=True)
    var = jnp.mean((y - mean) ** 2, axis=-1, keepdims=True)
    normed = (y - mean) / jnp.sqrt(var + LN_EPS)
    return normed * params["ln_gamma"] + params["ln_beta"]


def _reference_proj_ln(x2d, w_t, b, gamma, beta):
    y = x2d @ w_t + b
    mean = jnp.mean(y, axis=-1, keepdims=True)
    var = jnp.mean((y - mean) ** 2, axis=-1, keepdims=True)
    return ((y - mean) / jnp.sqrt(var + LN_EPS)) * gamma + beta


if __name__ == "__main__":
    key = jax.random.PRNGKey(0)
    D = 128          # output_dim (lane width)
    B = 2            # batch
    S_FOURIER = 4    # fourier seq len
    S_PASS = 3       # passthrough seq len  -> S_total = 4 + 1 + 3 = 8
    N_LANG = 17      # integer conditioner vocab (max_val - min_val + 1)

    keys = jax.random.split(key, 12)
    params = {
        # FourierConditioner buffer: randn(output_dim//2, input_dim) * std
        "fourier_weight": jax.random.normal(keys[0], (D // 2, 1), jnp.float32),
        # IntegerConditioner embedding table
        "int_embed": jax.random.normal(keys[1], (N_LANG, D), jnp.float32) * 0.02,
        # PrefixConditioner.project = nn.Linear(D, D); stored transposed (in, out)
        "proj_w_t": jax.random.normal(keys[2], (D, D), jnp.float32) * (1.0 / jnp.sqrt(D)),
        "proj_b": jax.random.normal(keys[3], (D,), jnp.float32) * 0.01,
        # nn.LayerNorm(D)
        "ln_gamma": jnp.ones((D,), jnp.float32),
        "ln_beta": jnp.zeros((D,), jnp.float32),
    }

    cond_dict = {
        "speaking_rate": jax.random.uniform(keys[4], (B, S_FOURIER, 1), jnp.float32),
        "language_id": jax.random.randint(keys[5], (B, 1), 0, N_LANG, jnp.int32),
        "speaker_embedding": jax.random.normal(keys[6], (B, S_PASS, D), jnp.float32),
    }
    ref = _reference_forward(cond_dict, params)

    # --- test 1: fused path, f32, real tiny shape (no concat slab, no padding) ---
    out = jax.block_until_ready(prefix_conditioner_forward(cond_dict, params))
    assert out.shape == (B, S_FOURIER + 1 + S_PASS, D)
    assert jnp.allclose(out, ref, atol=1e-4, rtol=1e-4)

    # --- test 2: bf16 operands + bf16 output (valid on v5e/v6e/v7x) --------------
    out_bf16 = jax.block_until_ready(
        prefix_conditioner_forward(cond_dict, params, use_bf16=True, out_bf16=True)
    )
    assert out_bf16.dtype == jnp.bfloat16
    assert jnp.allclose(out_bf16.astype(jnp.float32), ref, atol=5e-2, rtol=5e-2)

    # --- test 3: B=3, odd S_total, batch-1 speaker embedding broadcast via index_map
    B3, S_PASS3 = 3, 5
    cond_dict3 = {
        "speaking_rate": jax.random.uniform(keys[7], (B3, S_FOURIER, 1), jnp.float32),
        "language_id": jax.random.randint(keys[8], (B3, 1), 0, N_LANG, jnp.int32),
        "speaker_embedding": jax.random.normal(keys[9], (1, S_PASS3, D), jnp.float32),
    }
    out3 = jax.block_until_ready(prefix_conditioner_forward(cond_dict3, params))
    ref3 = _reference_forward(cond_dict3, params)
    assert out3.shape == (B3, S_FOURIER + 1 + S_PASS3, D)
    assert jnp.allclose(out3, ref3, atol=1e-4, rtol=1e-4)

    # --- test 4: generic large-N path, even-split tiling (600 -> 2 x 304 = 608) ---
    N_BIG = 600
    x_big = jax.random.normal(keys[10], (N_BIG, D), jnp.float32)
    ref_big = _reference_proj_ln(
        x_big, params["proj_w_t"], params["proj_b"],
        params["ln_gamma"], params["ln_beta"],
    )
    out_big = jax.block_until_ready(
        project_and_layernorm(
            x_big, params["proj_w_t"], params["proj_b"],
            params["ln_gamma"], params["ln_beta"],
        )
    )
    assert out_big.shape == (N_BIG, D)
    assert jnp.allclose(out_big, ref_big, atol=1e-4, rtol=1e-4)

    # --- test 5: generic large-N path, bf16 in / bf16 out (16-row alignment) ------
    out_big_bf16 = jax.block_until_ready(
        project_and_layernorm(
            x_big.astype(jnp.bfloat16),   # cast at producer side
            params["proj_w_t"], params["proj_b"],
            params["ln_gamma"], params["ln_beta"],
            use_bf16=True, out_dtype=jnp.bfloat16,
        )
    )
    assert out_big_bf16.dtype == jnp.bfloat16
    assert jnp.allclose(out_big_bf16.astype(jnp.float32), ref_big, atol=5e-2, rtol=5e-2)

    print("KERNEL_OK")
</pallas_src>

<mosaic_0001>
module attributes {stable_mosaic.version = 11 : i64} {
  func.func @kernel(%arg0: i32, %arg1: memref<1x4x128xf32, #tpu.memory_space<vmem>>, %arg2: memref<1x1x128xf32, #tpu.memory_space<vmem>>, %arg3: memref<1x3x128xf32, #tpu.memory_space<vmem>>, %arg4: memref<128x128xf32, #tpu.memory_space<vmem>>, %arg5: memref<8x128xf32, #tpu.memory_space<vmem>>, %arg6: memref<1x8x128xf32, #tpu.memory_space<vmem>>) attributes {dimension_semantics = [#tpu.dimension_semantics<parallel>], iteration_bounds = array<i64: 2>, scalar_prefetch = 0 : i64, scratch_operands = 0 : i64, tpu.core_type = #tpu.core_type<tc>, window_params = [{transform_indices = @transform_0, window_bounds = array<i64: 1, 4, 128>}, {transform_indices = @transform_1, window_bounds = array<i64: 1, 1, 128>}, {transform_indices = @transform_2, window_bounds = array<i64: 1, 3, 128>}, {pipeline_mode = #tpu.pipeline_mode<synchronous>, transform_indices = @transform_3, window_bounds = array<i64: 128, 128>}, {pipeline_mode = #tpu.pipeline_mode<synchronous>, transform_indices = @transform_4, window_bounds = array<i64: 8, 128>}, {transform_indices = @transform_5, window_bounds = array<i64: 1, 8, 128>}]} {
    %c0 = arith.constant 0 : index
    %c0_0 = arith.constant 0 : index
    %0 = vector.load %arg4[%c0, %c0_0] : memref<128x128xf32, #tpu.memory_space<vmem>>, vector<128x128xf32>
    %c0_1 = arith.constant 0 : index
    %c0_2 = arith.constant 0 : index
    %1 = vector.load %arg5[%c0_1, %c0_2] : memref<8x128xf32, #tpu.memory_space<vmem>>, vector<1x128xf32>
    %c1 = arith.constant 1 : index
    %c0_3 = arith.constant 0 : index
    %2 = vector.load %arg5[%c1, %c0_3] : memref<8x128xf32, #tpu.memory_space<vmem>>, vector<1x128xf32>
    %c2 = arith.constant 2 : index
    %c0_4 = arith.constant 0 : index
    %3 = vector.load %arg5[%c2, %c0_4] : memref<8x128xf32, #tpu.memory_space<vmem>>, vector<1x128xf32>
    %c0_5 = arith.constant 0 : index
    %c0_6 = arith.constant 0 : index
    %c0_7 = arith.constant 0 : index
    %4 = vector.load %arg1[%c0_5, %c0_6, %c0_7] : memref<1x4x128xf32, #tpu.memory_space<vmem>>, vector<1x4x128xf32>
    %5 = vector.shape_cast %4 : vector<1x4x128xf32> to vector<4x128xf32>
    %cst = arith.constant dense<0.000000e+00> : vector<4x128xf32>
    %6 = tpu.matmul %5, %0, %cst {dimension_numbers = #tpu.dot_dimension_numbers<[1], [0], [0], [1], [0, 0, 1, 1], [], []>} : vector<4x128xf32>, vector<128x128xf32>, vector<4x128xf32> -> vector<4x128xf32>
    %7 = vector.broadcast %1 : vector<1x128xf32> to vector<4x128xf32>
    %8 = arith.addf %6, %7 : vector<4x128xf32>
    %cst_8 = arith.constant dense<0.000000e+00> : vector<4xf32>
    %9 = vector.multi_reduction <add>, %8, %cst_8 [1] : vector<4x128xf32> to vector<4xf32>
    %10 = vector.shape_cast %9 : vector<4xf32> to vector<4x1xf32>
    %cst_9 = arith.constant 7.812500e-03 : f32
    %11 = vector.broadcast %cst_9 : f32 to vector<4x1xf32>
    %12 = arith.mulf %10, %11 : vector<4x1xf32>
    %13 = vector.broadcast %12 : vector<4x1xf32> to vector<4x128xf32>
    %14 = arith.subf %8, %13 : vector<4x128xf32>
    %15 = arith.mulf %14, %14 : vector<4x128xf32>
    %cst_10 = arith.constant dense<0.000000e+00> : vector<4xf32>
    %16 = vector.multi_reduction <add>, %15, %cst_10 [1] : vector<4x128xf32> to vector<4xf32>
    %17 = vector.shape_cast %16 : vector<4xf32> to vector<4x1xf32>
    %cst_11 = arith.constant 7.812500e-03 : f32
    %18 = vector.broadcast %cst_11 : f32 to vector<4x1xf32>
    %19 = arith.mulf %17, %18 : vector<4x1xf32>
    %cst_12 = arith.constant 9.99999974E-6 : f32
    %20 = vector.broadcast %cst_12 : f32 to vector<4x1xf32>
    %21 = arith.addf %19, %20 : vector<4x1xf32>
    %22 = math.rsqrt %21 : vector<4x1xf32>
    %23 = vector.broadcast %22 : vector<4x1xf32> to vector<4x128xf32>
    %24 = arith.mulf %14, %23 : vector<4x128xf32>
    %25 = vector.broadcast %2 : vector<1x128xf32> to vector<4x128xf32>
    %26 = arith.mulf %24, %25 : vector<4x128xf32>
    %27 = vector.broadcast %3 : vector<1x128xf32> to vector<4x128xf32>
    %28 = arith.addf %26, %27 : vector<4x128xf32>
    %c0_13 = arith.constant 0 : index
    %c0_14 = arith.constant 0 : index
    %c0_15 = arith.constant 0 : index
    %29 = vector.load %arg6[%c0_13, %c0_14, %c0_15] : memref<1x8x128xf32, #tpu.memory_space<vmem>>, vector<1x4x128xf32>
    %30 = vector.shape_cast %29 : vector<1x4x128xf32> to vector<4x128xf32>
    %31 = vector.shape_cast %28 : vector<4x128xf32> to vector<1x4x128xf32>
    tpu.vector_store %arg6[%c0_13, %c0_14, %c0_15], %31 {strides = array<i32>} : memref<1x8x128xf32, #tpu.memory_space<vmem>>, vector<1x4x128xf32>,
    %c0_16 = arith.constant 0 : index
    %c0_17 = arith.constant 0 : index
    %c0_18 = arith.constant 0 : index
    %32 = vector.load %arg2[%c0_16, %c0_17, %c0_18] : memref<1x1x128xf32, #tpu.memory_space<vmem>>, vector<1x1x128xf32>
    %33 = vector.shape_cast %32 : vector<1x1x128xf32> to vector<1x128xf32>
    %cst_19 = arith.constant dense<0.000000e+00> : vector<1x128xf32>
    %34 = tpu.matmul %33, %0, %cst_19 {dimension_numbers = #tpu.dot_dimension_numbers<[1], [0], [0], [1], [0, 0, 1, 1], [], []>} : vector<1x128xf32>, vector<128x128xf32>, vector<1x128xf32> -> vector<1x128xf32>
    %35 = arith.addf %34, %1 : vector<1x128xf32>
    %cst_20 = arith.constant dense<0.000000e+00> : vector<1xf32>
    %36 = vector.multi_reduction <add>, %35, %cst_20 [1] : vector<1x128xf32> to vector<1xf32>
    %37 = vector.shape_cast %36 : vector<1xf32> to vector<1x1xf32>
    %cst_21 = arith.constant 7.812500e-03 : f32
    %38 = vector.broadcast %cst_21 : f32 to vector<1x1xf32>
    %39 = arith.mulf %37, %38 : vector<1x1xf32>
    %40 = vector.broadcast %39 : vector<1x1xf32> to vector<1x128xf32>
    %41 = arith.subf %35, %40 : vector<1x128xf32>
    %42 = arith.mulf %41, %41 : vector<1x128xf32>
    %cst_22 = arith.constant dense<0.000000e+00> : vector<1xf32>
    %43 = vector.multi_reduction <add>, %42, %cst_22 [1] : vector<1x128xf32> to vector<1xf32>
    %44 = vector.shape_cast %43 : vector<1xf32> to vector<1x1xf32>
    %cst_23 = arith.constant 7.812500e-03 : f32
    %45 = vector.broadcast %cst_23 : f32 to vector<1x1xf32>
    %46 = arith.mulf %44, %45 : vector<1x1xf32>
    %cst_24 = arith.constant 9.99999974E-6 : f32
    %47 = vector.broadcast %cst_24 : f32 to vector<1x1xf32>
    %48 = arith.addf %46, %47 : vector<1x1xf32>
    %49 = math.rsqrt %48 : vector<1x1xf32>
    %50 = vector.broadcast %49 : vector<1x1xf32> to vector<1x128xf32>
    %51 = arith.mulf %41, %50 : vector<1x128xf32>
    %52 = arith.mulf %51, %2 : vector<1x128xf32>
    %53 = arith.addf %52, %3 : vector<1x128xf32>
    %c0_25 = arith.constant 0 : index
    %c4 = arith.constant 4 : index
    %c0_26 = arith.constant 0 : index
    %54 = vector.load %arg6[%c0_25, %c4, %c0_26] : memref<1x8x128xf32, #tpu.memory_space<vmem>>, vector<1x1x128xf32>
    %55 = vector.shape_cast %54 : vector<1x1x128xf32> to vector<1x128xf32>
    %56 = vector.shape_cast %53 : vector<1x128xf32> to vector<1x1x128xf32>
    tpu.vector_store %arg6[%c0_25, %c4, %c0_26], %56 {strides = array<i32>} : memref<1x8x128xf32, #tpu.memory_space<vmem>>, vector<1x1x128xf32>,
    %c0_27 = arith.constant 0 : index
    %c0_28 = arith.constant 0 : index
    %c0_29 = arith.constant 0 : index
    %57 = vector.load %arg3[%c0_27, %c0_28, %c0_29] : memref<1x3x128xf32, #tpu.memory_space<vmem>>, vector<1x3x128xf32>
    %58 = vector.shape_cast %57 : vector<1x3x128xf32> to vector<3x128xf32>
    %cst_30 = arith.constant dense<0.000000e+00> : vector<3x128xf32>
    %59 = tpu.matmul %58, %0, %cst_30 {dimension_numbers = #tpu.dot_dimension_numbers<[1], [0], [0], [1], [0, 0, 1, 1], [], []>} : vector<3x128xf32>, vector<128x128xf32>, vector<3x128xf32> -> vector<3x128xf32>
    %60 = vector.broadcast %1 : vector<1x128xf32> to vector<3x128xf32>
    %61 = arith.addf %59, %60 : vector<3x128xf32>
    %cst_31 = arith.constant dense<0.000000e+00> : vector<3xf32>
    %62 = vector.multi_reduction <add>, %61, %cst_31 [1] : vector<3x128xf32> to vector<3xf32>
    %63 = vector.shape_cast %62 : vector<3xf32> to vector<3x1xf32>
    %cst_32 = arith.constant 7.812500e-03 : f32
    %64 = vector.broadcast %cst_32 : f32 to vector<3x1xf32>
    %65 = arith.mulf %63, %64 : vector<3x1xf32>
    %66 = vector.broadcast %65 : vector<3x1xf32> to vector<3x128xf32>
    %67 = arith.subf %61, %66 : vector<3x128xf32>
    %68 = arith.mulf %67, %67 : vector<3x128xf32>
    %cst_33 = arith.constant dense<0.000000e+00> : vector<3xf32>
    %69 = vector.multi_reduction <add>, %68, %cst_33 [1] : vector<3x128xf32> to vector<3xf32>
    %70 = vector.shape_cast %69 : vector<3xf32> to vector<3x1xf32>
    %cst_34 = arith.constant 7.812500e-03 : f32
    %71 = vector.broadcast %cst_34 : f32 to vector<3x1xf32>
    %72 = arith.mulf %70, %71 : vector<3x1xf32>
    %cst_35 = arith.constant 9.99999974E-6 : f32
    %73 = vector.broadcast %cst_35 : f32 to vector<3x1xf32>
    %74 = arith.addf %72, %73 : vector<3x1xf32>
    %75 = math.rsqrt %74 : vector<3x1xf32>
    %76 = vector.broadcast %75 : vector<3x1xf32> to vector<3x128xf32>
    %77 = arith.mulf %67, %76 : vector<3x128xf32>
    %78 = vector.broadcast %2 : vector<1x128xf32> to vector<3x128xf32>
    %79 = arith.mulf %77, %78 : vector<3x128xf32>
    %80 = vector.broadcast %3 : vector<1x128xf32> to vector<3x128xf32>
    %81 = arith.addf %79, %80 : vector<3x128xf32>
    %c0_36 = arith.constant 0 : index
    %c5 = arith.constant 5 : index
    %c0_37 = arith.constant 0 : index
    %82 = vector.load %arg6[%c0_36, %c5, %c0_37] : memref<1x8x128xf32, #tpu.memory_space<vmem>>, vector<1x3x128xf32>
    %83 = vector.shape_cast %82 : vector<1x3x128xf32> to vector<3x128xf32>
    %84 = vector.shape_cast %81 : vector<3x128xf32> to vector<1x3x128xf32>
    tpu.vector_store %arg6[%c0_36, %c5, %c0_37], %84 {strides = array<i32>} : memref<1x8x128xf32, #tpu.memory_space<vmem>>, vector<1x3x128xf32>,
    return
  }
  func.func @transform_0(%arg0: i32) -> (i32, i32, i32) {
    %c0_i32 = arith.constant 0 : i32
    %c0_i32_0 = arith.constant 0 : i32
    %c0_i32_1 = arith.constant 0 : i32
    return %arg0, %c0_i32, %c0_i32_0 : i32, i32, i32
  }
  func.func @transform_1(%arg0: i32) -> (i32, i32, i32) {
    %c0_i32 = arith.constant 0 : i32
    %c0_i32_0 = arith.constant 0 : i32
    %c0_i32_1 = arith.constant 0 : i32
    return %arg0, %c0_i32, %c0_i32_0 : i32, i32, i32
  }
  func.func @transform_2(%arg0: i32) -> (i32, i32, i32) {
    %c0_i32 = arith.constant 0 : i32
    %c0_i32_0 = arith.constant 0 : i32
    %c0_i32_1 = arith.constant 0 : i32
    return %arg0, %c0_i32, %c0_i32_0 : i32, i32, i32
  }
  func.func @transform_3(%arg0: i32) -> (i32, i32) {
    %c0_i32 = arith.constant 0 : i32
    %c0_i32_0 = arith.constant 0 : i32
    %c0_i32_1 = arith.constant 0 : i32
    return %c0_i32, %c0_i32_0 : i32, i32
  }
  func.func @transform_4(%arg0: i32) -> (i32, i32) {
    %c0_i32 = arith.constant 0 : i32
    %c0_i32_0 = arith.constant 0 : i32
    %c0_i32_1 = arith.constant 0 : i32
    return %c0_i32, %c0_i32_0 : i32, i32
  }
  func.func @transform_5(%arg0: i32) -> (i32, i32, i32) {
    %c0_i32 = arith.constant 0 : i32
    %c0_i32_0 = arith.constant 0 : i32
    %c0_i32_1 = arith.constant 0 : i32
    return %arg0, %c0_i32, %c0_i32_0 : i32, i32, i32
  }
}

</mosaic_0001>

<llo_original>
// kernel: tpu_custom_call.1
$region0: #{tpu_custom_call.1}
  #allocation0 [shape = 'u32[]', space=smem, size = 0x4, offset = 0x4, fixed_abs, tag = 'smem constant byte address 0x4 - core index']
  #allocation1 [shape = 'u32[144,128]{1,0:T(1,128)}', space=vmem, size = 0x12000, scoped, tag = 'internal scratch']
  %s0 = inlined_call_operand.vmem [shape: f32[2,4,128], index: 0, kind: input, shape index: {}]
  %s1 = inlined_call_operand.hbm [shape: f32[2,1,128], index: 1, kind: input, shape index: {}]
  %s2 = inlined_call_operand.vmem [shape: f32[2,3,128], index: 2, kind: input, shape index: {}]
  %s3 = inlined_call_operand.hbm [shape: f32[128,128], index: 3, kind: input, shape index: {}]
  %s4 = inlined_call_operand.vmem [shape: f32[8,128], index: 4, kind: input, shape index: {}]
  %s5 = inlined_call_operand.hbm [shape: f32[2,8,128], index: 5, kind: output, shape index: {}]
  %s6 = sld [smem:[#allocation0]]
  $region61: #{tpu_custom_call.1} parent=0
    _
  %s8 = ssub.s32 1, %s6
  %s9 = scalar_select 0, %s8, %s6
  $region1: #{tpu_custom_call.1} parent=0
    #allocation2 [shape = 'u8[1024]{0}', space=vmem, size = 0x400, scoped, tag = 'input window, operand 1']
    #allocation3 [shape = 's32[2]{0}', space=sflag, size = 0x8, scoped, tag = 'scoped memory for tpu_custom_call.1']
    #allocation4 [shape = 's32[2]{0}', space=sflag, size = 0x8, scoped, tag = 'scoped memory for tpu_custom_call.1']
    #allocation5 [shape = 'u8[65536]{0}', space=vmem, size = 0x10000, scoped, tag = 'input window, operand 3, single buffered']
    #allocation6 [shape = 's32[1]{0}', space=sflag, size = 0x4, scoped, tag = 'scoped memory for tpu_custom_call.1']
    #allocation7 [shape = 'u8[8192]{0}', space=vmem, size = 0x2000, scoped, tag = 'output window, operand 0']
    %10 = vsyncpa [#allocation3], 0
    %s11 = scalar_lea.sflag [#allocation3], 1
    %12 = vsyncpa %s11, 0
    %13 = vsyncpa [#allocation6], 0
    %14 = vsyncpa [#allocation4], 0
    %s15 = scalar_lea.sflag [#allocation4], 1
    %16 = vsyncpa %s15, 0
    loop: start=0, step=1, limit=4
    $region2: #{tpu_custom_call.1} parent=1 // loop_pre_header
      _
    $region3: #{tpu_custom_call.1} parent=1 // loop_header
      %s18 = sphi 0, %s22
      %p19 = scmp.ge.s32.totalorder %s18, 4
      %s28 = sphi 0, %s30
      %s31 = sphi 0, %s28
      %s32 = sphi 0, %s31
      %s48 = sphi 0, %s32
      %s54 = sphi 0, %s56
      %s57 = sphi 0, %s54
      %s58 = sphi 0, %s57
      %s74 = sphi 0, %s58
      %s80 = sphi 0, %s82
      %s83 = sphi 0, %s80
      %s84 = sphi 0, %s83
      %s100 = sphi 0, %s84
      %s104 = sphi 0, %s104
      %s106 = sphi 0, %s104
      %s107 = sphi 0, %s106
      %s121 = sphi 0, %s107
      %s125 = sphi 0, %s125
      %s127 = sphi 0, %s125
      %s128 = sphi 0, %s127
      %s142 = sphi 0, %s128
      %s148 = sphi 0, %s150
      %s151 = sphi 0, %s148
      %s152 = sphi 0, %s151
      %s168 = sphi 0, %s152
    $region4: #{tpu_custom_call.1} parent=1 // loop_header_branch
      %21 = sbr.rel (%p19) target = $region8
    $region5: #{tpu_custom_call.1} parent=1 // loop_body
      %s23 = ssub.s32 %s18, 1
      %s24 = ssub.s32 %s18, 2
      %s25 = sadd.s32 %s18, 1
      %s26 = ssub.s32 %s18, %s25
      %p27 = scmp.eq.s32.totalorder %s26, 0
      %s29 = sadd.s32 %s28, 1
      %s30 = scalar_select %p27, %s28, %s29
      %p33 = pneg %p27
      %p34 = scmp.eq.s32.totalorder %s18, 1
      %p35 = por %p33, %p34
      %p36 = scmp.ne.s32.totalorder %s28, %s31
      %p37 = scmp.eq.s32.totalorder %s18, 0
      %p38 = por %p36, %p37
      %p39 = scmp.ne.s32.totalorder %s28, %s31
      %p40 = scmp.eq.s32.totalorder %s23, 1
      %p41 = por %p39, %p40
      %p42 = scmp.ne.s32.totalorder %s31, %s32
      %p43 = scmp.eq.s32.totalorder %s23, 0
      %p44 = por %p42, %p43
      %p45 = scmp.ne.s32.totalorder %s31, %s32
      %p46 = scmp.eq.s32.totalorder %s24, 1
      %p47 = por %p45, %p46
      %p49 = scmp.ne.s32.totalorder %s32, %s48
      %p50 = scmp.eq.s32.totalorder %s24, 0
      %p51 = por %p49, %p50
      %s52 = ssub.s32 %s18, %s25
      %p53 = scmp.eq.s32.totalorder %s52, 0
      %s55 = sadd.s32 %s54, 1
      %s56 = scalar_select %p53, %s54, %s55
      %p59 = pneg %p53
      %p60 = scmp.eq.s32.totalorder %s18, 1
      %p61 = por %p59, %p60
      %p62 = scmp.ne.s32.totalorder %s54, %s57
      %p63 = scmp.eq.s32.totalorder %s18, 0
      %p64 = por %p62, %p63
      %p65 = scmp.ne.s32.totalorder %s54, %s57
      %p66 = scmp.eq.s32.totalorder %s23, 1
      %p67 = por %p65, %p66
      %p68 = scmp.ne.s32.totalorder %s57, %s58
      %p69 = scmp.eq.s32.totalorder %s23, 0
      %p70 = por %p68, %p69
      %p71 = scmp.ne.s32.totalorder %s57, %s58
      %p72 = scmp.eq.s32.totalorder %s24, 1
      %p73 = por %p71, %p72
      %p75 = scmp.ne.s32.totalorder %s58, %s74
      %p76 = scmp.eq.s32.totalorder %s24, 0
      %p77 = por %p75, %p76
      %s78 = ssub.s32 %s18, %s25
      %p79 = scmp.eq.s32.totalorder %s78, 0
      %s81 = sadd.s32 %s80, 1
      %s82 = scalar_select %p79, %s80, %s81
      %p85 = pneg %p79
      %p86 = scmp.eq.s32.totalorder %s18, 1
      %p87 = por %p85, %p86
      %p88 = scmp.ne.s32.totalorder %s80, %s83
      %p89 = scmp.eq.s32.totalorder %s18, 0
      %p90 = por %p88, %p89
      %p91 = scmp.ne.s32.totalorder %s80, %s83
      %p92 = scmp.eq.s32.totalorder %s23, 1
      %p93 = por %p91, %p92
      %p94 = scmp.ne.s32.totalorder %s83, %s84
      %p95 = scmp.eq.s32.totalorder %s23, 0
      %p96 = por %p94, %p95
      %p97 = scmp.ne.s32.totalorder %s83, %s84
      %p98 = scmp.eq.s32.totalorder %s24, 1
      %p99 = por %p97, %p98
      %p101 = scmp.ne.s32.totalorder %s84, %s100
      %p102 = scmp.eq.s32.totalorder %s24, 0
      %p103 = por %p101, %p102
      %s105 = sadd.s32 %s104, 1
      %p108 = scmp.eq.s32.totalorder %s18, 1
      %p109 = scmp.ne.s32.totalorder %s104, %s106
      %p110 = scmp.eq.s32.totalorder %s18, 0
      %p111 = por %p109, %p110
      %p112 = scmp.ne.s32.totalorder %s104, %s106
      %p113 = scmp.eq.s32.totalorder %s23, 1
      %p114 = por %p112, %p113
      %p115 = scmp.ne.s32.totalorder %s106, %s107
      %p116 = scmp.eq.s32.totalorder %s23, 0
      %p117 = por %p115, %p116
      %p118 = scmp.ne.s32.totalorder %s106, %s107
      %p119 = scmp.eq.s32.totalorder %s24, 1
      %p120 = por %p118, %p119
      %p122 = scmp.ne.s32.totalorder %s107, %s121
      %p123 = scmp.eq.s32.totalorder %s24, 0
      %p124 = por %p122, %p123
      %s126 = sadd.s32 %s125, 1
      %p129 = scmp.eq.s32.totalorder %s18, 1
      %p130 = scmp.ne.s32.totalorder %s125, %s127
      %p131 = scmp.eq.s32.totalorder %s18, 0
      %p132 = por %p130, %p131
      %p133 = scmp.ne.s32.totalorder %s125, %s127
      %p134 = scmp.eq.s32.totalorder %s23, 1
      %p135 = por %p133, %p134
      %p136 = scmp.ne.s32.totalorder %s127, %s128
      %p137 = scmp.eq.s32.totalorder %s23, 0
      %p138 = por %p136, %p137
      %p139 = scmp.ne.s32.totalorder %s127, %s128
      %p140 = scmp.eq.s32.totalorder %s24, 1
      %p141 = por %p139, %p140
      %p143 = scmp.ne.s32.totalorder %s128, %s142
      %p144 = scmp.eq.s32.totalorder %s24, 0
      %p145 = por %p143, %p144
      %s146 = ssub.s32 %s18, %s25
      %p147 = scmp.eq.s32.totalorder %s146, 0
      %s149 = sadd.s32 %s148, 1
      %s150 = scalar_select %p147, %s148, %s149
      %p153 = pneg %p147
      %p154 = scmp.eq.s32.totalorder %s18, 1
      %p155 = por %p153, %p154
      %p156 = scmp.ne.s32.totalorder %s148, %s151
      %p157 = scmp.eq.s32.totalorder %s18, 0
      %p158 = por %p156, %p157
      %p159 = scmp.ne.s32.totalorder %s148, %s151
      %p160 = scmp.eq.s32.totalorder %s23, 1
      %p161 = por %p159, %p160
      %p162 = scmp.ne.s32.totalorder %s151, %s152
      %p163 = scmp.eq.s32.totalorder %s23, 0
      %p164 = por %p162, %p163
      %p165 = scmp.ne.s32.totalorder %s151, %s152
      %p166 = scmp.eq.s32.totalorder %s24, 1
      %p167 = por %p165, %p166
      %p169 = scmp.ne.s32.totalorder %s152, %s168
      %p170 = scmp.eq.s32.totalorder %s24, 0
      %p171 = por %p169, %p170
      %p172 = scmp.le.s32.totalorder 1, %s18
      %p173 = scmp.lt.s32.totalorder %s18, 3
      %p174 = pnand %p172, %p173
      %p175 = pneg %p174
      // Predicated region
      $region9: #{tpu_custom_call.1} parent=5 // pred_check
        _
      $region10: #{tpu_custom_call.1} parent=5 // pred_check_branch
        %177 = sbr.rel (%p174) target = $region12
      $region11: #{tpu_custom_call.1} parent=5 // pred_region
        %s178 = ssub.s32 %s18, 1
        // Predicated region
        $region13: #{tpu_custom_call.1} parent=11 // pred_check
          %p179 = pneg %p117
        $region14: #{tpu_custom_call.1} parent=11 // pred_check_branch
          %181 = sbr.rel (%p179) target = $region16
        $region15: #{tpu_custom_call.1} parent=11 // pred_region
          %s183 = ssub.s32 2048, 2048
          %184 = vsyncadd [#allocation6], %s183
          %s185 = sshll.u32 [#allocation5], 4
          %s186 = int_to_ptr.vmem [resolvable:$true] %s185
          %191 = dma.hbm_to_vmem [thread:$0]  %s3, 2048, %s186, [#allocation6], 128, 128, 8
        $region16: #{tpu_custom_call.1} parent=11 // pred_fallthru
          _
        // Predicated region
        $region17: #{tpu_custom_call.1} parent=11 // pred_check
          %p192 = pneg %p138
        $region18: #{tpu_custom_call.1} parent=11 // pred_check_branch
          %194 = sbr.rel (%p192) target = $region20
        $region19: #{tpu_custom_call.1} parent=11 // pred_region
          _
        $region20: #{tpu_custom_call.1} parent=11 // pred_fallthru
          _
      $region12: #{tpu_custom_call.1} parent=5 // pred_fallthru
        _
      %p195 = scmp.lt.s32.totalorder %s18, 2
      // Predicated region
      $region21: #{tpu_custom_call.1} parent=5 // pred_check
        %p196 = pneg %p195
      $region22: #{tpu_custom_call.1} parent=5 // pred_check_branch
        %198 = sbr.rel (%p196) target = $region24
      $region23: #{tpu_custom_call.1} parent=5 // pred_region
        // Predicated region
        $region25: #{tpu_custom_call.1} parent=23 // pred_check
          %p199 = pneg %p38
        $region26: #{tpu_custom_call.1} parent=23 // pred_check_branch
          %201 = sbr.rel (%p199) target = $region28
        $region27: #{tpu_custom_call.1} parent=23 // pred_region
          %p202 = scmp.lt.s32.totalorder %s18, 1
          %s203 = scalar_select %p202, %s18, 1
          %s204 = smul.addr %s203, 4
          %s205 = scalar_lea.vmem %s0, %s204
        $region28: #{tpu_custom_call.1} parent=23 // pred_fallthru
          _
        // Predicated region
        $region29: #{tpu_custom_call.1} parent=23 // pred_check
          %p206 = pneg %p64
        $region30: #{tpu_custom_call.1} parent=23 // pred_check_branch
          %208 = sbr.rel (%p206) target = $region32
        $region31: #{tpu_custom_call.1} parent=23 // pred_region
          %s209 = sand.u32 %s54, 1
          %s210 = scalar_lea.sflag [#allocation3], %s209
          %s211 = sand.u32 %s54, 1
          %s212 = scalar_lea.vmem [#allocation2], %s211
          %s214 = ssub.s32 16, 16
          %215 = vsyncadd %s210, %s214
          %s216 = smul.addr %s18, 16
          %s217 = scalar_lea.hbm %s1, %s216
          %s219 = sshll.u32 %s212, 4
          %s220 = int_to_ptr.vmem [resolvable:$true] %s219
          %222 = dma.hbm_to_vmem [thread:$0]  %s217, 16, %s220, %s210
        $region32: #{tpu_custom_call.1} parent=23 // pred_fallthru
          _
        // Predicated region
        $region33: #{tpu_custom_call.1} parent=23 // pred_check
          %p223 = pneg %p90
        $region34: #{tpu_custom_call.1} parent=23 // pred_check_branch
          %225 = sbr.rel (%p223) target = $region36
        $region35: #{tpu_custom_call.1} parent=23 // pred_region
          %p226 = scmp.lt.s32.totalorder %s18, 1
          %s227 = scalar_select %p226, %s18, 1
          %s228 = smul.addr %s227, 4
          %s229 = scalar_lea.vmem %s2, %s228
        $region36: #{tpu_custom_call.1} parent=23 // pred_fallthru
          _
      $region24: #{tpu_custom_call.1} parent=5 // pred_fallthru
        _
      %p230 = scmp.le.s32.totalorder 1, %s18
      %p231 = scmp.lt.s32.totalorder %s18, 3
      %p232 = pnand %p230, %p231
      %p233 = pneg %p232
      // Predicated region
      $region37: #{tpu_custom_call.1} parent=5 // pred_check
        _
      $region38: #{tpu_custom_call.1} parent=5 // pred_check_branch
        %235 = sbr.rel (%p232) target = $region40
      $region39: #{tpu_custom_call.1} parent=5 // pred_region
        %s236 = ssub.s32 %s18, 1
        %s237 = sand.u32 %s57, 1
        %s238 = scalar_lea.sflag [#allocation3], %s237
        %s239 = sand.u32 %s57, 1
        %s240 = scalar_lea.vmem [#allocation2], %s239
        // Predicated region
        $region41: #{tpu_custom_call.1} parent=39 // pred_check
          %p241 = pneg %p70
        $region42: #{tpu_custom_call.1} parent=39 // pred_check_branch
          %243 = sbr.rel (%p241) target = $region44
        $region43: #{tpu_custom_call.1} parent=39 // pred_region
          %244 = dma.done %s238, 16
        $region44: #{tpu_custom_call.1} parent=39 // pred_fallthru
          _
        // Predicated region
        $region45: #{tpu_custom_call.1} parent=39 // pred_check
          %p245 = pneg %p117
        $region46: #{tpu_custom_call.1} parent=39 // pred_check_branch
          %247 = sbr.rel (%p245) target = $region48
        $region47: #{tpu_custom_call.1} parent=39 // pred_region
          %248 = dma.done [#allocation6], 2048
        $region48: #{tpu_custom_call.1} parent=39 // pred_fallthru
          _
        %p249 = scmp.lt.s32.totalorder %s23, 1
        %s250 = scalar_select %p249, %s23, 1
        %s251 = smul.addr %s250, 4
        %s252 = scalar_lea.vmem %s0, %s251
        %p253 = pneg %p44
        %p254 = pneg %p41
        %s255 = sand.u32 %s57, 1
        %s256 = scalar_lea.sflag [#allocation3], %s255
        %s257 = sand.u32 %s57, 1
        %s258 = scalar_lea.vmem [#allocation2], %s257
        %p259 = pneg %p70
        %p260 = pneg %p67
        %p261 = scmp.lt.s32.totalorder %s23, 1
        %s262 = scalar_select %p261, %s23, 1
        %s263 = smul.addr %s262, 4
        %s264 = scalar_lea.vmem %s2, %s263
        %p265 = pneg %p96
        %p266 = pneg %p93
        %p267 = pneg %p117
        %p268 = pneg %p114
        %p269 = pneg %p138
        %p270 = pneg %p135
        %p271 = pneg %p164
        %p272 = pneg %p161
        %s273 = sand.u32 %s151, 1
        %s274 = scalar_lea.sflag [#allocation4], %s273
        %s275 = sand.u32 %s151, 1
        %s276 = smul.addr %s275, 8
        %s277 = scalar_lea.vmem [#allocation7], %s276
        %p278 = scmp.lt.s32.totalorder %s23, 1
        %s279 = scalar_select %p278, %s23, 1
        %s280 = smul.addr %s279, 4
        %s281 = scalar_lea.vmem %s0, %s280
        %p282 = scmp.lt.s32.totalorder %s23, 1
        %s283 = scalar_select %p282, %s23, 1
        %s284 = smul.addr %s283, 4
        %s285 = scalar_lea.vmem %s2, %s284
        %v286 = vld [vmem:[#allocation5] sm:$0xff]
        %v287 = vld [vmem:[#allocation5 + $0x8] sm:$0xff]
        %v288 = vld [vmem:[#allocation5 + $0x10] sm:$0xff]
        %v289 = vld [vmem:[#allocation5 + $0x18] sm:$0xff]
        %v290 = vld [vmem:[#allocation5 + $0x20] sm:$0xff]
        %v291 = vld [vmem:[#allocation5 + $0x28] sm:$0xff]
        %v292 = vld [vmem:[#allocation5 + $0x30] sm:$0xff]
        %v293 = vld [vmem:[#allocation5 + $0x38] sm:$0xff]
        %v294 = vld [vmem:[#allocation5 + $0x40] sm:$0xff]
        %v295 = vld [vmem:[#allocation5 + $0x48] sm:$0xff]
        %v296 = vld [vmem:[#allocation5 + $0x50] sm:$0xff]
        %v297 = vld [vmem:[#allocation5 + $0x58] sm:$0xff]
        %v298 = vld [vmem:[#allocation5 + $0x60] sm:$0xff]
        %v299 = vld [vmem:[#allocation5 + $0x68] sm:$0xff]
        %v300 = vld [vmem:[#allocation5 + $0x70] sm:$0xff]
        %v301 = vld [vmem:[#allocation5 + $0x78] sm:$0xff]
        %v302 = vld [vmem:[%s4] sm:$0x1]
        %v303 = vld [vmem:[%s4 + $0x1] sm:$0x1]
        %v304 = vld [vmem:[%s4 + $0x2] sm:$0x1]
        %v305 = vld [vmem:[%s281] sm:$0xf]
        %v306 = vlaneseq
        %v307 = vshrl.u32 %v306, 7
        %v308 = vsub.s32 0, %v307
        %v309 = vrot.slane %v302, %v308
        %310 = vmatprep.subr.mxu0 0.0
        %311 = vmatpush1.msra.mxu0 %v286
        %312 = vmatprep.subr.mxu0 0.0
        %313 = vmatpush1.msra.mxu0 %v287
        %314 = vmatprep.subr.mxu0 0.0
        %315 = vmatpush1.msra.mxu0 %v288
        %316 = vmatprep.subr.mxu0 0.0
        %317 = vmatpush1.msra.mxu0 %v289
        %318 = vmatprep.subr.mxu0 0.0
        %319 = vmatpush1.msra.mxu0 %v290
        %320 = vmatprep.subr.mxu0 0.0
        %321 = vmatpush1.msra.mxu0 %v291
        %322 = vmatprep.subr.mxu0 0.0
        %323 = vmatpush1.msra.mxu0 %v292
        %324 = vmatprep.subr.mxu0 0.0
        %325 = vmatpush1.msra.mxu0 %v293
        %326 = vmatprep.subr.mxu0 0.0
        %327 = vmatpush1.msra.mxu0 %v294
        %328 = vmatprep.subr.mxu0 0.0
        %329 = vmatpush1.msra.mxu0 %v295
        %330 = vmatprep.subr.mxu0 0.0
        %331 = vmatpush1.msra.mxu0 %v296
        %332 = vmatprep.subr.mxu0 0.0
        %333 = vmatpush1.msra.mxu0 %v297
        %334 = vmatprep.subr.mxu0 0.0
        %335 = vmatpush1.msra.mxu0 %v298
        %336 = vmatprep.subr.mxu0 0.0
        %337 = vmatpush1.msra.mxu0 %v299
        %338 = vmatprep.subr.mxu0 0.0
        %339 = vmatpush1.msra.mxu0 %v300
        %340 = vmatprep.subr.mxu0 0.0
        %341 = vmatpush1.msra.mxu0 %v301
        %342 = vmatprep.subr.mxu0 0.0
        %343 = vmatpush1.msra.mxu0 0.0
        %344 = vmatprep.subr.mxu0 0.0
        %345 = vmatpush1.msra.mxu0 0.0
        %346 = vmatprep.subr.mxu0 0.0
        %347 = vmatpush1.msra.mxu0 0.0
        %348 = vmatprep.subr.mxu0 0.0
        %349 = vmatpush1.msra.mxu0 0.0
        %350 = vmatprep.subr.mxu0 0.0
        %351 = vmatpush1.msra.mxu0 0.0
        %352 = vmatprep.subr.mxu0 0.0
        %353 = vmatpush1.msra.mxu0 0.0
        %354 = vmatprep.subr.mxu0 0.0
        %355 = vmatpush1.msra.mxu0 0.0
        %356 = vmatprep.subr.mxu0 0.0
        %357 = vmatpush1.msra.mxu0 0.0
        %358 = vmatprep.subr.mxu0 0.0
        %359 = vmatpush1.msra.mxu0 0.0
        %360 = vmatprep.subr.mxu0 0.0
        %361 = vmatpush1.msra.mxu0 0.0
        %362 = vmatprep.subr.mxu0 0.0
        %363 = vmatpush1.msra.mxu0 0.0
        %364 = vmatprep.subr.mxu0 0.0
        %365 = vmatpush1.msra.mxu0 0.0
        %366 = vmatprep.subr.mxu0 0.0
        %367 = vmatpush1.msra.mxu0 0.0
        %368 = vmatprep.subr.mxu0 0.0
        %369 = vmatpush1.msra.mxu0 0.0
        %370 = vmatprep.subr.mxu0 0.0
        %371 = vmatpush1.msra.mxu0 0.0
        %372 = vmatprep.subr.mxu0 0.0
        %373 = vmatpush1.msra.mxu0 0.0
        %374 = vmatprep.mubr.f32.mxu0 0.0
        %375 = vmatmul.mubr.f32.gmra.mrb[0].mxu0 %v305
        %v376 = vpop.f32.mrb[0].mxu0
        %v377 = vadd.f32 %v309, %v376
        %v378 = vpop.f32.mrb[0].mxu0
        %379 = vdwg.mxu0
        %vm380 = vcmask 1043456
        %v381 = vsel %vm380, %v377, 0.0
        %382 = vadd.xlane.f32.xlu0 %v381
        %v383 = vpop.xlane.xlu0 %382
        %v384 = vmul.f32 %v383, 0.0078125
        %v385 = vsub.f32 %v377, %v384
        %v386 = vmul.f32 %v385, %v385
        %v387 = vsel %vm380, %v386, 0.0
        %388 = vadd.xlane.f32.xlu0 %v387
        %v389 = vpop.xlane.xlu0 %388
        %v390 = vmul.f32 %v389, 0.0078125
        %v391 = vadd.f32 %v390, 1e-05
        %v392 = vrsqrt.pop %v391
        %v393 = vmul.f32 %v385, %v392
        %v394 = vlaneseq
        %v395 = vshrl.u32 %v394, 7
        %v396 = vsub.s32 0, %v395
        %v397 = vrot.slane %v303, %v396
        %v398 = vmul.f32 %v393, %v397
        %v399 = vlaneseq
        %v400 = vshrl.u32 %v399, 7
        %v401 = vsub.s32 0, %v400
        %v402 = vrot.slane %v304, %v401
        %v403 = vadd.f32 %v398, %v402
        %404 = vst [vmem:[%s277] sm:$0xf] %v403
        %v405 = vld [vmem:[%s240] sm:$0x1]
        %406 = vmatprep.subr.mxu0 0.0
        %407 = vmatpush1.msra.mxu0 %v286
        %408 = vmatprep.subr.mxu0 0.0
        %409 = vmatpush1.msra.mxu0 %v287
        %410 = vmatprep.subr.mxu0 0.0
        %411 = vmatpush1.msra.mxu0 %v288
        %412 = vmatprep.subr.mxu0 0.0
        %413 = vmatpush1.msra.mxu0 %v289
        %414 = vmatprep.subr.mxu0 0.0
        %415 = vmatpush1.msra.mxu0 %v290
        %416 = vmatprep.subr.mxu0 0.0
        %417 = vmatpush1.msra.mxu0 %v291
        %418 = vmatprep.subr.mxu0 0.0
        %419 = vmatpush1.msra.mxu0 %v292
        %420 = vmatprep.subr.mxu0 0.0
        %421 = vmatpush1.msra.mxu0 %v293
        %422 = vmatprep.subr.mxu0 0.0
        %423 = vmatpush1.msra.mxu0 %v294
        %424 = vmatprep.subr.mxu0 0.0
        %425 = vmatpush1.msra.mxu0 %v295
        %426 = vmatprep.subr.mxu0 0.0
        %427 = vmatpush1.msra.mxu0 %v296
        %428 = vmatprep.subr.mxu0 0.0
        %429 = vmatpush1.msra.mxu0 %v297
        %430 = vmatprep.subr.mxu0 0.0
        %431 = vmatpush1.msra.mxu0 %v298
        %432 = vmatprep.subr.mxu0 0.0
        %433 = vmatpush1.msra.mxu0 %v299
        %434 = vmatprep.subr.mxu0 0.0
        %435 = vmatpush1.msra.mxu0 %v300
        %436 = vmatprep.subr.mxu0 0.0
        %437 = vmatpush1.msra.mxu0 %v301
        %438 = vmatprep.subr.mxu0 0.0
        %439 = vmatpush1.msra.mxu0 0.0
        %440 = vmatprep.subr.mxu0 0.0
        %441 = vmatpush1.msra.mxu0 0.0
        %442 = vmatprep.subr.mxu0 0.0
        %443 = vmatpush1.msra.mxu0 0.0
        %444 = vmatprep.subr.mxu0 0.0
        %445 = vmatpush1.msra.mxu0 0.0
        %446 = vmatprep.subr.mxu0 0.0
        %447 = vmatpush1.msra.mxu0 0.0
        %448 = vmatprep.subr.mxu0 0.0
        %449 = vmatpush1.msra.mxu0 0.0
        %450 = vmatprep.subr.mxu0 0.0
        %451 = vmatpush1.msra.mxu0 0.0
        %452 = vmatprep.subr.mxu0 0.0
        %453 = vmatpush1.msra.mxu0 0.0
        %454 = vmatprep.subr.mxu0 0.0
        %455 = vmatpush1.msra.mxu0 0.0
        %456 = vmatprep.subr.mxu0 0.0
        %457 = vmatpush1.msra.mxu0 0.0
        %458 = vmatprep.subr.mxu0 0.0
        %459 = vmatpush1.msra.mxu0 0.0
        %460 = vmatprep.subr.mxu0 0.0
        %461 = vmatpush1.msra.mxu0 0.0
        %462 = vmatprep.subr.mxu0 0.0
        %463 = vmatpush1.msra.mxu0 0.0
        %464 = vmatprep.subr.mxu0 0.0
        %465 = vmatpush1.msra.mxu0 0.0
        %466 = vmatprep.subr.mxu0 0.0
        %467 = vmatpush1.msra.mxu0 0.0
        %468 = vmatprep.subr.mxu0 0.0
        %469 = vmatpush1.msra.mxu0 0.0
        %470 = vmatprep.mubr.f32.mxu0 0.0
        %471 = vmatmul.mubr.f32.gmra.mrb[0].mxu0 %v405
        %v472 = vpop.f32.mrb[0].mxu0
        %v473 = vadd.f32 %v302, %v472
        %v474 = vpop.f32.mrb[0].mxu0
        %475 = vdwg.mxu0
        %vm476 = vcmask 1040384
        %v477 = vsel %vm476, %v473, 0.0
        %478 = vadd.xlane.f32.xlu0 %v477
        %v479 = vpop.xlane.xlu0 %478
        %v480 = vmul.f32 %v479, 0.0078125
        %v481 = vsub.f32 %v473, %v480
        %v482 = vmul.f32 %v481, %v481
        %v483 = vsel %vm476, %v482, 0.0
        %484 = vadd.xlane.f32.xlu0 %v483
        %v485 = vpop.xlane.xlu0 %484
        %v486 = vmul.f32 %v485, 0.0078125
        %v487 = vadd.f32 %v486, 1e-05
        %v488 = vrsqrt.pop %v487
        %v489 = vmul.f32 %v481, %v488
        %v490 = vmul.f32 %v489, %v303
        %v491 = vadd.f32 %v490, %v304
        %492 = vst [vmem:[%s277 + $0x4] sm:$0x1] %v491
        %v493 = vld [vmem:[%s285] sm:$0x7]
        %494 = vmatprep.subr.mxu0 0.0
        %495 = vmatpush1.msra.mxu0 %v286
        %496 = vmatprep.subr.mxu0 0.0
        %497 = vmatpush1.msra.mxu0 %v287
        %498 = vmatprep.subr.mxu0 0.0
        %499 = vmatpush1.msra.mxu0 %v288
        %500 = vmatprep.subr.mxu0 0.0
        %501 = vmatpush1.msra.mxu0 %v289
        %502 = vmatprep.subr.mxu0 0.0
        %503 = vmatpush1.msra.mxu0 %v290
        %504 = vmatprep.subr.mxu0 0.0
        %505 = vmatpush1.msra.mxu0 %v291
        %506 = vmatprep.subr.mxu0 0.0
        %507 = vmatpush1.msra.mxu0 %v292
        %508 = vmatprep.subr.mxu0 0.0
        %509 = vmatpush1.msra.mxu0 %v293
        %510 = vmatprep.subr.mxu0 0.0
        %511 = vmatpush1.msra.mxu0 %v294
        %512 = vmatprep.subr.mxu0 0.0
        %513 = vmatpush1.msra.mxu0 %v295
        %514 = vmatprep.subr.mxu0 0.0
        %515 = vmatpush1.msra.mxu0 %v296
        %516 = vmatprep.subr.mxu0 0.0
        %517 = vmatpush1.msra.mxu0 %v297
        %518 = vmatprep.subr.mxu0 0.0
        %519 = vmatpush1.msra.mxu0 %v298
        %520 = vmatprep.subr.mxu0 0.0
        %521 = vmatpush1.msra.mxu0 %v299
        %522 = vmatprep.subr.mxu0 0.0
        %523 = vmatpush1.msra.mxu0 %v300
        %524 = vmatprep.subr.mxu0 0.0
        %525 = vmatpush1.msra.mxu0 %v301
        %526 = vmatprep.subr.mxu0 0.0
        %527 = vmatpush1.msra.mxu0 0.0
        %528 = vmatprep.subr.mxu0 0.0
        %529 = vmatpush1.msra.mxu0 0.0
        %530 = vmatprep.subr.mxu0 0.0
        %531 = vmatpush1.msra.mxu0 0.0
        %532 = vmatprep.subr.mxu0 0.0
        %533 = vmatpush1.msra.mxu0 0.0
        %534 = vmatprep.subr.mxu0 0.0
        %535 = vmatpush1.msra.mxu0 0.0
        %536 = vmatprep.subr.mxu0 0.0
        %537 = vmatpush1.msra.mxu0 0.0
        %538 = vmatprep.subr.mxu0 0.0
        %539 = vmatpush1.msra.mxu0 0.0
        %540 = vmatprep.subr.mxu0 0.0
        %541 = vmatpush1.msra.mxu0 0.0
        %542 = vmatprep.subr.mxu0 0.0
        %543 = vmatpush1.msra.mxu0 0.0
        %544 = vmatprep.subr.mxu0 0.0
        %545 = vmatpush1.msra.mxu0 0.0
        %546 = vmatprep.subr.mxu0 0.0
        %547 = vmatpush1.msra.mxu0 0.0
        %548 = vmatprep.subr.mxu0 0.0
        %549 = vmatpush1.msra.mxu0 0.0
        %550 = vmatprep.subr.mxu0 0.0
        %551 = vmatpush1.msra.mxu0 0.0
        %552 = vmatprep.subr.mxu0 0.0
        %553 = vmatpush1.msra.mxu0 0.0
        %554 = vmatprep.subr.mxu0 0.0
        %555 = vmatpush1.msra.mxu0 0.0
        %556 = vmatprep.subr.mxu0 0.0
        %557 = vmatpush1.msra.mxu0 0.0
        %558 = vmatprep.mubr.f32.mxu0 0.0
        %559 = vmatmul.mubr.f32.gmra.mrb[0].mxu0 %v493
        %v560 = vpop.f32.mrb[0].mxu0
        %v561 = vadd.f32 %v309, %v560
        %v562 = vpop.f32.mrb[0].mxu0
        %563 = vdwg.mxu0
        %vm564 = vcmask 1042432
        %v565 = vsel %vm564, %v561, 0.0
        %566 = vadd.xlane.f32.xlu0 %v565
        %v567 = vpop.xlane.xlu0 %566
        %v568 = vmul.f32 %v567, 0.0078125
        %v569 = vsub.f32 %v561, %v568
        %v570 = vmul.f32 %v569, %v569
        %v571 = vsel %vm564, %v570, 0.0
        %572 = vadd.xlane.f32.xlu0 %v571
        %v573 = vpop.xlane.xlu0 %572
        %v574 = vmul.f32 %v573, 0.0078125
        %v575 = vadd.f32 %v574, 1e-05
        %v576 = vrsqrt.pop %v575
        %v577 = vmul.f32 %v569, %v576
        %v578 = vmul.f32 %v577, %v397
        %v579 = vadd.f32 %v578, %v402
        %580 = vst [vmem:[%s277 + $0x5] sm:$0x7] %v579
        %s581 = sand.u32 %s151, 1
        %s582 = scalar_lea.sflag [#allocation4], %s581
        %s583 = sand.u32 %s151, 1
        %s584 = smul.addr %s583, 8
        %s585 = scalar_lea.vmem [#allocation7], %s584
        // Predicated region
        $region49: #{tpu_custom_call.1} parent=39 // pred_check
          %p586 = pneg %p161
        $region50: #{tpu_custom_call.1} parent=39 // pred_check_branch
          %588 = sbr.rel (%p586) target = $region52
        $region51: #{tpu_custom_call.1} parent=39 // pred_region
          %s590 = ssub.s32 128, 128
          %591 = vsyncadd %s582, %s590
          %s592 = smul.addr %s23, 128
          %s593 = scalar_lea.hbm %s5, %s592
          %s595 = sshll.u32 %s585, 4
          %s596 = int_to_ptr.vmem [resolvable:$true] %s595
          %598 = dma.vmem_to_hbm [thread:$0]  %s596, 128, %s593, %s582
        $region52: #{tpu_custom_call.1} parent=39 // pred_fallthru
          _
      $region40: #{tpu_custom_call.1} parent=5 // pred_fallthru
        _
      %p599 = scmp.le.s32.totalorder 2, %s18
      // Predicated region
      $region53: #{tpu_custom_call.1} parent=5 // pred_check
        %p600 = pneg %p599
      $region54: #{tpu_custom_call.1} parent=5 // pred_check_branch
        %602 = sbr.rel (%p600) target = $region56
      $region55: #{tpu_custom_call.1} parent=5 // pred_region
        %s603 = ssub.s32 %s18, 2
        // Predicated region
        $region57: #{tpu_custom_call.1} parent=55 // pred_check
          %p604 = pneg %p167
        $region58: #{tpu_custom_call.1} parent=55 // pred_check_branch
          %606 = sbr.rel (%p604) target = $region60
        $region59: #{tpu_custom_call.1} parent=55 // pred_region
          %s607 = sand.u32 %s152, 1
          %s608 = scalar_lea.sflag [#allocation4], %s607
          %s609 = sand.u32 %s152, 1
          %s610 = smul.addr %s609, 8
          %s611 = scalar_lea.vmem [#allocation7], %s610
          %612 = dma.done %s608, 128
        $region60: #{tpu_custom_call.1} parent=55 // pred_fallthru
          _
      $region56: #{tpu_custom_call.1} parent=5 // pred_fallthru
        _
    $region6: #{tpu_custom_call.1} parent=1 // loop_footer
      %s22 = sadd.s32 1, %s18
    $region7: #{tpu_custom_call.1} parent=1 // loop_footer_branch
      %17 = sbr.rel target = $region3
    $region8: #{tpu_custom_call.1} parent=1 // loop_exit
      _
    %613 = vsyncpa [#allocation3], 1
    %s614 = scalar_lea.sflag [#allocation3], 1
    %615 = vsyncpa %s614, 1
    %616 = vsyncpa [#allocation6], 1
    %617 = vsyncpa [#allocation4], 1
    %s618 = scalar_lea.sflag [#allocation4], 1
    %619 = vsyncpa %s618, 1

</llo_original>
